<compile_context>
chip_gen: v5e
topology: v5e:2x2
jax: 0.10.0
libtpu: 0.0.40
codegen_flags: <defaults>
</compile_context>

<pallas_src>
import functools

import jax
import jax.numpy as jnp
import numpy as np
from jax.experimental import pallas as pl
from jax.experimental.pallas import tpu as pltpu


# ------------------------- fused Pallas kernel -------------------------

def _make_fused_deconv_kernel(K, Nb, Hout, Wout, Wp, apply_norm, eps=1e-5):
    """Per-grid-step kernel: conv-transpose as ONE stacked-tap MXU contraction
    + (optional bias) + (optional) InstanceNorm, all on values in VMEM/vregs."""
    Lw = (Hout - 1) * Wp + Wout  # matmul free-dim width (row stride Wp)

    def kernel(x_ref, w_ref, p_ref, o_ref):
        # x_ref : (Nb, Cin, Hp*Wp)       flattened dilated+padded samples
        # w_ref : (Cout, K*K*Cin)        stacked-tap (flipped) weight matrix
        # p_ref : (3, Cout, 1)           [bias; gamma; beta] columns
        # o_ref : (Nb, Cout, Hout*Wout)  lane-dense output block (NCHW, HW flat)
        w = w_ref[...]
        for nb in range(Nb):
            # In-kernel im2col: K*K shifted windows stacked along sublanes.
            win = jnp.concatenate(
                [x_ref[nb, :, pl.ds(kh * Wp + kw, Lw)]
                 for kh in range(K) for kw in range(K)],
                axis=0)                                           # (K*K*Cin, Lw)

            # One MXU contraction over K*K*Cin (MXU accumulates internally).
            acc = jnp.dot(w, win, preferred_element_type=jnp.float32)  # (Cout, Lw)

            # Compact rows (stride Wp -> Wout) as a value (single relayout),
            # so the output ref gets exactly one lane-dense store below.
            y = jnp.concatenate(
                [acc[:, oh * Wp: oh * Wp + Wout] for oh in range(Hout)],
                axis=-1)                                          # (Cout, HW)

            if apply_norm:
                # Bias skipped: a per-channel constant is cancelled exactly by
                # the InstanceNorm mean subtraction.
                mean = jnp.mean(y, axis=-1, keepdims=True)
                d = y - mean
                var = jnp.mean(d * d, axis=-1, keepdims=True)
                y = d * jax.lax.rsqrt(var + eps) * p_ref[1] + p_ref[2]
            else:
                y = y + p_ref[0]

            o_ref[nb] = y.astype(o_ref.dtype)

    return kernel


# ------------------------- module forward -------------------------

def deconv_layer_forward(x, weight, bias, gamma=None, beta=None, *,
                         stride, output_padding, norm="instance",
                         samples_per_block=1, matmul_dtype=jnp.float32):
    """Equivalent of DeConvLayer.forward.

    x:      (N, Cin, H, W)     float32
    weight: (Cin, Cout, K, K)  ConvTranspose2d weight layout
    bias:   (Cout,)
    gamma, beta: (Cout,)       InstanceNorm affine params (ignored if norm=='None')
    """
    assert norm in ("instance", "batch", "None")
    if norm == "batch":
        # TODO(synk): BatchNorm2d (running stats) not implemented.
        raise NotImplementedError("norm='batch' is not implemented")

    N, Cin, H, W = x.shape
    _, Cout, K, _ = weight.shape
    p = K // 2
    s, op = stride, output_padding
    Hout = (H - 1) * s - 2 * p + K + op
    Wout = (W - 1) * s - 2 * p + K + op
    Hd, Wd = (H - 1) * s + 1, (W - 1) * s + 1
    lo, hi = K - 1 - p, K - 1 - p + op
    Hp, Wp = Hd + lo + hi, Wd + lo + hi           # == Hout + K - 1, Wout + K - 1

    Nb = samples_per_block
    assert N % Nb == 0, "samples_per_block must divide the batch size"

    # XLA glue (small): zero-insertion (fractional stride) + pad, then a FREE
    # row-major reshape of the spatial dims to one flat axis.
    # TODO(synk): stride-s sub-pixel decomposition would remove this dilated
    # intermediate and ~s^2 of the MXU MACs.
    x_d = jnp.zeros((N, Cin, Hd, Wd), jnp.float32).at[:, :, ::s, ::s].set(x)
    x_pad = jnp.pad(x_d, ((0, 0), (0, 0), (lo, hi), (lo, hi)))
    F = Hp * Wp
    xf = x_pad.reshape(N, Cin, F).astype(matmul_dtype)

    # Stacked-tap weight matrix: w_mat[co, (kh*K+kw)*Cin + ci] =
    #   weight[ci, co, K-1-kh, K-1-kw]   (flipped kernel -> plain correlation).
    KKC = K * K * Cin
    w_mat = jnp.flip(weight, axis=(2, 3)).transpose(1, 2, 3, 0)   # (Cout, K, K, Cin)
    w_mat = w_mat.reshape(Cout, KKC).astype(matmul_dtype)

    if gamma is None:
        gamma = jnp.ones((Cout,), jnp.float32)
    if beta is None:
        beta = jnp.zeros((Cout,), jnp.float32)
    params = jnp.stack([bias, gamma, beta]).astype(jnp.float32).reshape(3, Cout, 1)

    HW = Hout * Wout
    Lw = (Hout - 1) * Wp + Wout
    kernel = _make_fused_deconv_kernel(K, Nb, Hout, Wout, Wp,
                                       apply_norm=(norm == "instance"))

    # Explicit VMEM budget: double-buffered x/out blocks + resident weights and
    # params + in-kernel values (stacked windows, acc, compacted y), 2x headroom.
    item = jnp.dtype(matmul_dtype).itemsize
    est = (2 * (Nb * Cin * F * item + Nb * Cout * HW * 4)
           + Cout * KKC * item + 3 * Cout * 4
           + 2 * Nb * (KKC * Lw + Cout * Lw + Cout * HW) * 4)
    vmem_limit = int(min(max(2 * est, 32 * 1024 * 1024), 64 * 1024 * 1024))

    out_flat = pl.pallas_call(
        kernel,
        out_shape=jax.ShapeDtypeStruct((N, Cout, HW), jnp.float32),
        grid=(N // Nb,),
        in_specs=[
            pl.BlockSpec((Nb, Cin, F), lambda n: (n, 0, 0)),
            pl.BlockSpec((Cout, KKC), lambda n: (0, 0)),
            pl.BlockSpec((3, Cout, 1), lambda n: (0, 0, 0)),
        ],
        out_specs=pl.BlockSpec((Nb, Cout, HW), lambda n: (n, 0, 0)),
        compiler_params=pltpu.CompilerParams(
            dimension_semantics=("parallel",),
            vmem_limit_bytes=vmem_limit),
    )(xf, w_mat, params)

    # Free (row-major) reshape back to NCHW 4-D.
    return out_flat.reshape(N, Cout, Hout, Wout)


# ------------------------- pure-JAX reference -------------------------

def _reference(x, weight, bias, gamma, beta, stride, output_padding, norm):
    K = weight.shape[2]
    p = K // 2
    w_conv = jnp.flip(weight, axis=(2, 3)).transpose(1, 0, 2, 3)  # (Cout, Cin, K, K)
    y = jax.lax.conv_general_dilated(
        x, w_conv, window_strides=(1, 1),
        padding=[(K - 1 - p, K - 1 - p + output_padding)] * 2,
        lhs_dilation=(stride, stride),
        dimension_numbers=("NCHW", "OIHW", "NCHW"))
    y = y + bias[None, :, None, None]
    if norm == "None":
        return y
    mean = y.mean(axis=(2, 3), keepdims=True)
    var = ((y - mean) ** 2).mean(axis=(2, 3), keepdims=True)
    yn = (y - mean) * jax.lax.rsqrt(var + 1e-5)
    return yn * gamma[None, :, None, None] + beta[None, :, None, None]


# ------------------------- main -------------------------

if __name__ == "__main__":
    # Shapes consistent with DeConvLayer(in=8, out=4, k=3, stride=2, out_pad=1)
    N, Cin, Cout, H, W = 2, 8, 4, 8, 8
    K, STRIDE, OUT_PAD = 3, 2, 1

    key = jax.random.PRNGKey(0)
    kx, kw, kb, kg, kbt = jax.random.split(key, 5)
    x = jax.random.normal(kx, (N, Cin, H, W), dtype=jnp.float32)
    weight = 0.1 * jax.random.normal(kw, (Cin, Cout, K, K), dtype=jnp.float32)
    bias = 0.1 * jax.random.normal(kb, (Cout,), dtype=jnp.float32)
    gamma = 1.0 + 0.1 * jax.random.normal(kg, (Cout,), dtype=jnp.float32)
    beta = 0.1 * jax.random.normal(kbt, (Cout,), dtype=jnp.float32)

    # Path 1: one sample per grid step (grid=(2,) "parallel" -> both TCs on
    # multi-TC chips), fused InstanceNorm.
    fwd_in = jax.jit(functools.partial(
        deconv_layer_forward, stride=STRIDE, output_padding=OUT_PAD,
        norm="instance", samples_per_block=1))
    out_in = jax.block_until_ready(fwd_in(x, weight, bias, gamma, beta))
    ref_in = _reference(x, weight, bias, gamma, beta, STRIDE, OUT_PAD, "instance")
    assert out_in.shape == (N, Cout, 16, 16), out_in.shape
    assert np.allclose(np.asarray(out_in), np.asarray(ref_in),
                       atol=1e-4, rtol=1e-4)

    # Path 2: 2 samples per grid step (amortized per-step overhead on
    # single-TC chips), no norm (bias-only epilogue).
    fwd_nn = jax.jit(functools.partial(
        deconv_layer_forward, stride=STRIDE, output_padding=OUT_PAD,
        norm="None", samples_per_block=2))
    out_nn = jax.block_until_ready(fwd_nn(x, weight, bias))
    ref_nn = _reference(x, weight, bias, gamma, beta, STRIDE, OUT_PAD, "None")
    assert out_nn.shape == (N, Cout, 16, 16), out_nn.shape
    assert np.allclose(np.asarray(out_nn), np.asarray(ref_nn),
                       atol=1e-4, rtol=1e-4)

    print("KERNEL_OK")
</pallas_src>

<mosaic_0001>
module attributes {stable_mosaic.version = 11 : i64} {
  func.func @kernel(%arg0: i32, %arg1: memref<1x8x324xf32, #tpu.memory_space<vmem>>, %arg2: memref<4x72xf32, #tpu.memory_space<vmem>>, %arg3: memref<3x4x1xf32, #tpu.memory_space<vmem>>, %arg4: memref<1x4x256xf32, #tpu.memory_space<vmem>>) attributes {dimension_semantics = [#tpu.dimension_semantics<parallel>], iteration_bounds = array<i64: 2>, scalar_prefetch = 0 : i64, scratch_operands = 0 : i64, tpu.core_type = #tpu.core_type<tc>, window_params = [{transform_indices = @transform_0, window_bounds = array<i64: 1, 8, 324>}, {pipeline_mode = #tpu.pipeline_mode<synchronous>, transform_indices = @transform_1, window_bounds = array<i64: 4, 72>}, {pipeline_mode = #tpu.pipeline_mode<synchronous>, transform_indices = @transform_2, window_bounds = array<i64: 3, 4, 1>}, {transform_indices = @transform_3, window_bounds = array<i64: 1, 4, 256>}]} {
    %c0 = arith.constant 0 : index
    %c0_0 = arith.constant 0 : index
    %0 = vector.load %arg2[%c0, %c0_0] : memref<4x72xf32, #tpu.memory_space<vmem>>, vector<4x72xf32>
    %c0_1 = arith.constant 0 : index
    %c0_2 = arith.constant 0 : index
    %c0_3 = arith.constant 0 : index
    %1 = vector.load %arg1[%c0_1, %c0_2, %c0_3] : memref<1x8x324xf32, #tpu.memory_space<vmem>>, vector<1x8x286xf32>
    %2 = vector.shape_cast %1 : vector<1x8x286xf32> to vector<8x286xf32>
    %c0_4 = arith.constant 0 : index
    %c0_5 = arith.constant 0 : index
    %c1 = arith.constant 1 : index
    %3 = vector.load %arg1[%c0_4, %c0_5, %c1] : memref<1x8x324xf32, #tpu.memory_space<vmem>>, vector<1x8x286xf32>
    %4 = vector.shape_cast %3 : vector<1x8x286xf32> to vector<8x286xf32>
    %c0_6 = arith.constant 0 : index
    %c0_7 = arith.constant 0 : index
    %c2 = arith.constant 2 : index
    %5 = vector.load %arg1[%c0_6, %c0_7, %c2] : memref<1x8x324xf32, #tpu.memory_space<vmem>>, vector<1x8x286xf32>
    %6 = vector.shape_cast %5 : vector<1x8x286xf32> to vector<8x286xf32>
    %c0_8 = arith.constant 0 : index
    %c0_9 = arith.constant 0 : index
    %c18 = arith.constant 18 : index
    %7 = vector.load %arg1[%c0_8, %c0_9, %c18] : memref<1x8x324xf32, #tpu.memory_space<vmem>>, vector<1x8x286xf32>
    %8 = vector.shape_cast %7 : vector<1x8x286xf32> to vector<8x286xf32>
    %c0_10 = arith.constant 0 : index
    %c0_11 = arith.constant 0 : index
    %c19 = arith.constant 19 : index
    %9 = vector.load %arg1[%c0_10, %c0_11, %c19] : memref<1x8x324xf32, #tpu.memory_space<vmem>>, vector<1x8x286xf32>
    %10 = vector.shape_cast %9 : vector<1x8x286xf32> to vector<8x286xf32>
    %c0_12 = arith.constant 0 : index
    %c0_13 = arith.constant 0 : index
    %c20 = arith.constant 20 : index
    %11 = vector.load %arg1[%c0_12, %c0_13, %c20] : memref<1x8x324xf32, #tpu.memory_space<vmem>>, vector<1x8x286xf32>
    %12 = vector.shape_cast %11 : vector<1x8x286xf32> to vector<8x286xf32>
    %c0_14 = arith.constant 0 : index
    %c0_15 = arith.constant 0 : index
    %c36 = arith.constant 36 : index
    %13 = vector.load %arg1[%c0_14, %c0_15, %c36] : memref<1x8x324xf32, #tpu.memory_space<vmem>>, vector<1x8x286xf32>
    %14 = vector.shape_cast %13 : vector<1x8x286xf32> to vector<8x286xf32>
    %c0_16 = arith.constant 0 : index
    %c0_17 = arith.constant 0 : index
    %c37 = arith.constant 37 : index
    %15 = vector.load %arg1[%c0_16, %c0_17, %c37] : memref<1x8x324xf32, #tpu.memory_space<vmem>>, vector<1x8x286xf32>
    %16 = vector.shape_cast %15 : vector<1x8x286xf32> to vector<8x286xf32>
    %c0_18 = arith.constant 0 : index
    %c0_19 = arith.constant 0 : index
    %c38 = arith.constant 38 : index
    %17 = vector.load %arg1[%c0_18, %c0_19, %c38] : memref<1x8x324xf32, #tpu.memory_space<vmem>>, vector<1x8x286xf32>
    %18 = vector.shape_cast %17 : vector<1x8x286xf32> to vector<8x286xf32>
    %19 = tpu.concatenate %2, %4, %6, %8, %10, %12, %14, %16, %18 in 0 : vector<8x286xf32>, vector<8x286xf32>, vector<8x286xf32>, vector<8x286xf32>, vector<8x286xf32>, vector<8x286xf32>, vector<8x286xf32>, vector<8x286xf32>, vector<8x286xf32> -> vector<72x286xf32>
    %cst = arith.constant dense<0.000000e+00> : vector<4x286xf32>
    %20 = tpu.matmul %0, %19, %cst {dimension_numbers = #tpu.dot_dimension_numbers<[1], [0], [0], [1], [0, 0, 1, 1], [], []>} : vector<4x72xf32>, vector<72x286xf32>, vector<4x286xf32> -> vector<4x286xf32>
    %21 = vector.extract_strided_slice %20 {offsets = [0, 0], sizes = [4, 16], strides = [1, 1]} : vector<4x286xf32> to vector<4x16xf32>
    %22 = vector.extract_strided_slice %20 {offsets = [0, 18], sizes = [4, 16], strides = [1, 1]} : vector<4x286xf32> to vector<4x16xf32>
    %23 = vector.extract_strided_slice %20 {offsets = [0, 36], sizes = [4, 16], strides = [1, 1]} : vector<4x286xf32> to vector<4x16xf32>
    %24 = vector.extract_strided_slice %20 {offsets = [0, 54], sizes = [4, 16], strides = [1, 1]} : vector<4x286xf32> to vector<4x16xf32>
    %25 = vector.extract_strided_slice %20 {offsets = [0, 72], sizes = [4, 16], strides = [1, 1]} : vector<4x286xf32> to vector<4x16xf32>
    %26 = vector.extract_strided_slice %20 {offsets = [0, 90], sizes = [4, 16], strides = [1, 1]} : vector<4x286xf32> to vector<4x16xf32>
    %27 = vector.extract_strided_slice %20 {offsets = [0, 108], sizes = [4, 16], strides = [1, 1]} : vector<4x286xf32> to vector<4x16xf32>
    %28 = vector.extract_strided_slice %20 {offsets = [0, 126], sizes = [4, 16], strides = [1, 1]} : vector<4x286xf32> to vector<4x16xf32>
    %29 = vector.extract_strided_slice %20 {offsets = [0, 144], sizes = [4, 16], strides = [1, 1]} : vector<4x286xf32> to vector<4x16xf32>
    %30 = vector.extract_strided_slice %20 {offsets = [0, 162], sizes = [4, 16], strides = [1, 1]} : vector<4x286xf32> to vector<4x16xf32>
    %31 = vector.extract_strided_slice %20 {offsets = [0, 180], sizes = [4, 16], strides = [1, 1]} : vector<4x286xf32> to vector<4x16xf32>
    %32 = vector.extract_strided_slice %20 {offsets = [0, 198], sizes = [4, 16], strides = [1, 1]} : vector<4x286xf32> to vector<4x16xf32>
    %33 = vector.extract_strided_slice %20 {offsets = [0, 216], sizes = [4, 16], strides = [1, 1]} : vector<4x286xf32> to vector<4x16xf32>
    %34 = vector.extract_strided_slice %20 {offsets = [0, 234], sizes = [4, 16], strides = [1, 1]} : vector<4x286xf32> to vector<4x16xf32>
    %35 = vector.extract_strided_slice %20 {offsets = [0, 252], sizes = [4, 16], strides = [1, 1]} : vector<4x286xf32> to vector<4x16xf32>
    %36 = vector.extract_strided_slice %20 {offsets = [0, 270], sizes = [4, 16], strides = [1, 1]} : vector<4x286xf32> to vector<4x16xf32>
    %37 = tpu.concatenate %21, %22, %23, %24, %25, %26, %27, %28, %29, %30, %31, %32, %33, %34, %35, %36 in 1 : vector<4x16xf32>, vector<4x16xf32>, vector<4x16xf32>, vector<4x16xf32>, vector<4x16xf32>, vector<4x16xf32>, vector<4x16xf32>, vector<4x16xf32>, vector<4x16xf32>, vector<4x16xf32>, vector<4x16xf32>, vector<4x16xf32>, vector<4x16xf32>, vector<4x16xf32>, vector<4x16xf32>, vector<4x16xf32> -> vector<4x256xf32>
    %cst_20 = arith.constant dense<0.000000e+00> : vector<4xf32>
    %38 = vector.multi_reduction <add>, %37, %cst_20 [1] : vector<4x256xf32> to vector<4xf32>
    %39 = vector.shape_cast %38 : vector<4xf32> to vector<4x1xf32>
    %cst_21 = arith.constant 2.560000e+02 : f32
    %40 = vector.broadcast %cst_21 : f32 to vector<4x1xf32>
    %41 = arith.divf %39, %40 : vector<4x1xf32>
    %42 = vector.broadcast %41 : vector<4x1xf32> to vector<4x256xf32>
    %43 = arith.subf %37, %42 : vector<4x256xf32>
    %44 = arith.mulf %43, %43 : vector<4x256xf32>
    %cst_22 = arith.constant dense<0.000000e+00> : vector<4xf32>
    %45 = vector.multi_reduction <add>, %44, %cst_22 [1] : vector<4x256xf32> to vector<4xf32>
    %46 = vector.shape_cast %45 : vector<4xf32> to vector<4x1xf32>
    %cst_23 = arith.constant 2.560000e+02 : f32
    %47 = vector.broadcast %cst_23 : f32 to vector<4x1xf32>
    %48 = arith.divf %46, %47 : vector<4x1xf32>
    %cst_24 = arith.constant 9.99999974E-6 : f32
    %49 = vector.broadcast %cst_24 : f32 to vector<4x1xf32>
    %50 = arith.addf %48, %49 : vector<4x1xf32>
    %51 = math.rsqrt %50 : vector<4x1xf32>
    %52 = vector.broadcast %51 : vector<4x1xf32> to vector<4x256xf32>
    %53 = arith.mulf %43, %52 : vector<4x256xf32>
    %c1_25 = arith.constant 1 : index
    %c0_26 = arith.constant 0 : index
    %c0_27 = arith.constant 0 : index
    %54 = vector.load %arg3[%c1_25, %c0_26, %c0_27] : memref<3x4x1xf32, #tpu.memory_space<vmem>>, vector<1x4x1xf32>
    %55 = vector.shape_cast %54 : vector<1x4x1xf32> to vector<4x1xf32>
    %56 = vector.broadcast %55 : vector<4x1xf32> to vector<4x256xf32>
    %57 = arith.mulf %53, %56 : vector<4x256xf32>
    %c2_28 = arith.constant 2 : index
    %c0_29 = arith.constant 0 : index
    %c0_30 = arith.constant 0 : index
    %58 = vector.load %arg3[%c2_28, %c0_29, %c0_30] : memref<3x4x1xf32, #tpu.memory_space<vmem>>, vector<1x4x1xf32>
    %59 = vector.shape_cast %58 : vector<1x4x1xf32> to vector<4x1xf32>
    %60 = vector.broadcast %59 : vector<4x1xf32> to vector<4x256xf32>
    %61 = arith.addf %57, %60 : vector<4x256xf32>
    %c0_31 = arith.constant 0 : index
    %c0_32 = arith.constant 0 : index
    %c0_33 = arith.constant 0 : index
    %62 = vector.load %arg4[%c0_31, %c0_32, %c0_33] : memref<1x4x256xf32, #tpu.memory_space<vmem>>, vector<1x4x256xf32>
    %63 = vector.shape_cast %62 : vector<1x4x256xf32> to vector<4x256xf32>
    %64 = vector.shape_cast %61 : vector<4x256xf32> to vector<1x4x256xf32>
    tpu.vector_store %arg4[%c0_31, %c0_32, %c0_33], %64 {strides = array<i32>} : memref<1x4x256xf32, #tpu.memory_space<vmem>>, vector<1x4x256xf32>,
    return
  }
  func.func @transform_0(%arg0: i32) -> (i32, i32, i32) {
    %c0_i32 = arith.constant 0 : i32
    %c0_i32_0 = arith.constant 0 : i32
    %c0_i32_1 = arith.constant 0 : i32
    return %arg0, %c0_i32, %c0_i32_0 : i32, i32, i32
  }
  func.func @transform_1(%arg0: i32) -> (i32, i32) {
    %c0_i32 = arith.constant 0 : i32
    %c0_i32_0 = arith.constant 0 : i32
    %c0_i32_1 = arith.constant 0 : i32
    return %c0_i32, %c0_i32_0 : i32, i32
  }
  func.func @transform_2(%arg0: i32) -> (i32, i32, i32) {
    %c0_i32 = arith.constant 0 : i32
    %c0_i32_0 = arith.constant 0 : i32
    %c0_i32_1 = arith.constant 0 : i32
    %c0_i32_2 = arith.constant 0 : i32
    return %c0_i32, %c0_i32_0, %c0_i32_1 : i32, i32, i32
  }
  func.func @transform_3(%arg0: i32) -> (i32, i32, i32) {
    %c0_i32 = arith.constant 0 : i32
    %c0_i32_0 = arith.constant 0 : i32
    %c0_i32_1 = arith.constant 0 : i32
    return %arg0, %c0_i32, %c0_i32_0 : i32, i32, i32
  }
}

</mosaic_0001>

<llo_original>
// kernel: deconv_layer_forward.1
$region0: #{deconv_layer_forward.1}
  #allocation0 [shape = 'u32[]', space=smem, size = 0x4, offset = 0x4, fixed_abs, tag = 'smem constant byte address 0x4 - core index']
  #allocation1 [shape = 'u32[72,128]{1,0:T(1,128)}', space=vmem, size = 0x9000, scoped, tag = 'internal scratch']
  %s0 = inlined_call_operand.vmem [shape: f32[2,8,324], index: 0, kind: input, shape index: {}]
  %s1 = inlined_call_operand.vmem [shape: f32[4,72], index: 1, kind: input, shape index: {}]
  %s2 = inlined_call_operand.vmem [shape: f32[3,4,1], index: 2, kind: input, shape index: {}]
  %s3 = inlined_call_operand.vmem [shape: f32[2,4,256], index: 3, kind: output, shape index: {}]
  %s4 = sld [smem:[#allocation0]]
  $region45: #{deconv_layer_forward.1} parent=0
    _
  %s6 = ssub.s32 1, %s4
  %s7 = scalar_select 0, %s6, %s4
  loop: start=0, step=1, limit=4
  $region2: #{deconv_layer_forward.1} parent=0 // loop_pre_header
    _
  $region3: #{deconv_layer_forward.1} parent=0 // loop_header
    %s9 = sphi 0, %s13
    %p10 = scmp.ge.s32.totalorder %s9, 4
    %s19 = sphi 0, %s21
    %s22 = sphi 0, %s19
    %s23 = sphi 0, %s22
    %s39 = sphi 0, %s23
    %s43 = sphi 0, %s43
    %s45 = sphi 0, %s43
    %s46 = sphi 0, %s45
    %s60 = sphi 0, %s46
    %s64 = sphi 0, %s64
    %s66 = sphi 0, %s64
    %s67 = sphi 0, %s66
    %s81 = sphi 0, %s67
    %s87 = sphi 0, %s89
    %s90 = sphi 0, %s87
    %s91 = sphi 0, %s90
    %s107 = sphi 0, %s91
  $region4: #{deconv_layer_forward.1} parent=0 // loop_header_branch
    %12 = sbr.rel (%p10) target = $region8
  $region5: #{deconv_layer_forward.1} parent=0 // loop_body
    %s14 = ssub.s32 %s9, 1
    %s15 = ssub.s32 %s9, 2
    %s16 = sadd.s32 %s9, 1
    %s17 = ssub.s32 %s9, %s16
    %p18 = scmp.eq.s32.totalorder %s17, 0
    %s20 = sadd.s32 %s19, 1
    %s21 = scalar_select %p18, %s19, %s20
    %p24 = pneg %p18
    %p25 = scmp.eq.s32.totalorder %s9, 1
    %p26 = por %p24, %p25
    %p27 = scmp.ne.s32.totalorder %s19, %s22
    %p28 = scmp.eq.s32.totalorder %s9, 0
    %p29 = por %p27, %p28
    %p30 = scmp.ne.s32.totalorder %s19, %s22
    %p31 = scmp.eq.s32.totalorder %s14, 1
    %p32 = por %p30, %p31
    %p33 = scmp.ne.s32.totalorder %s22, %s23
    %p34 = scmp.eq.s32.totalorder %s14, 0
    %p35 = por %p33, %p34
    %p36 = scmp.ne.s32.totalorder %s22, %s23
    %p37 = scmp.eq.s32.totalorder %s15, 1
    %p38 = por %p36, %p37
    %p40 = scmp.ne.s32.totalorder %s23, %s39
    %p41 = scmp.eq.s32.totalorder %s15, 0
    %p42 = por %p40, %p41
    %s44 = sadd.s32 %s43, 1
    %p47 = scmp.eq.s32.totalorder %s9, 1
    %p48 = scmp.ne.s32.totalorder %s43, %s45
    %p49 = scmp.eq.s32.totalorder %s9, 0
    %p50 = por %p48, %p49
    %p51 = scmp.ne.s32.totalorder %s43, %s45
    %p52 = scmp.eq.s32.totalorder %s14, 1
    %p53 = por %p51, %p52
    %p54 = scmp.ne.s32.totalorder %s45, %s46
    %p55 = scmp.eq.s32.totalorder %s14, 0
    %p56 = por %p54, %p55
    %p57 = scmp.ne.s32.totalorder %s45, %s46
    %p58 = scmp.eq.s32.totalorder %s15, 1
    %p59 = por %p57, %p58
    %p61 = scmp.ne.s32.totalorder %s46, %s60
    %p62 = scmp.eq.s32.totalorder %s15, 0
    %p63 = por %p61, %p62
    %s65 = sadd.s32 %s64, 1
    %p68 = scmp.eq.s32.totalorder %s9, 1
    %p69 = scmp.ne.s32.totalorder %s64, %s66
    %p70 = scmp.eq.s32.totalorder %s9, 0
    %p71 = por %p69, %p70
    %p72 = scmp.ne.s32.totalorder %s64, %s66
    %p73 = scmp.eq.s32.totalorder %s14, 1
    %p74 = por %p72, %p73
    %p75 = scmp.ne.s32.totalorder %s66, %s67
    %p76 = scmp.eq.s32.totalorder %s14, 0
    %p77 = por %p75, %p76
    %p78 = scmp.ne.s32.totalorder %s66, %s67
    %p79 = scmp.eq.s32.totalorder %s15, 1
    %p80 = por %p78, %p79
    %p82 = scmp.ne.s32.totalorder %s67, %s81
    %p83 = scmp.eq.s32.totalorder %s15, 0
    %p84 = por %p82, %p83
    %s85 = ssub.s32 %s9, %s16
    %p86 = scmp.eq.s32.totalorder %s85, 0
    %s88 = sadd.s32 %s87, 1
    %s89 = scalar_select %p86, %s87, %s88
    %p92 = pneg %p86
    %p93 = scmp.eq.s32.totalorder %s9, 1
    %p94 = por %p92, %p93
    %p95 = scmp.ne.s32.totalorder %s87, %s90
    %p96 = scmp.eq.s32.totalorder %s9, 0
    %p97 = por %p95, %p96
    %p98 = scmp.ne.s32.totalorder %s87, %s90
    %p99 = scmp.eq.s32.totalorder %s14, 1
    %p100 = por %p98, %p99
    %p101 = scmp.ne.s32.totalorder %s90, %s91
    %p102 = scmp.eq.s32.totalorder %s14, 0
    %p103 = por %p101, %p102
    %p104 = scmp.ne.s32.totalorder %s90, %s91
    %p105 = scmp.eq.s32.totalorder %s15, 1
    %p106 = por %p104, %p105
    %p108 = scmp.ne.s32.totalorder %s91, %s107
    %p109 = scmp.eq.s32.totalorder %s15, 0
    %p110 = por %p108, %p109
    %p111 = scmp.le.s32.totalorder 1, %s9
    %p112 = scmp.lt.s32.totalorder %s9, 3
    %p113 = pnand %p111, %p112
    %p114 = pneg %p113
    // Predicated region
    $region9: #{deconv_layer_forward.1} parent=5 // pred_check
      _
    $region10: #{deconv_layer_forward.1} parent=5 // pred_check_branch
      %116 = sbr.rel (%p113) target = $region12
    $region11: #{deconv_layer_forward.1} parent=5 // pred_region
      %s117 = ssub.s32 %s9, 1
      // Predicated region
      $region13: #{deconv_layer_forward.1} parent=11 // pred_check
        %p118 = pneg %p56
      $region14: #{deconv_layer_forward.1} parent=11 // pred_check_branch
        %120 = sbr.rel (%p118) target = $region16
      $region15: #{deconv_layer_forward.1} parent=11 // pred_region
        _
      $region16: #{deconv_layer_forward.1} parent=11 // pred_fallthru
        _
      // Predicated region
      $region17: #{deconv_layer_forward.1} parent=11 // pred_check
        %p121 = pneg %p77
      $region18: #{deconv_layer_forward.1} parent=11 // pred_check_branch
        %123 = sbr.rel (%p121) target = $region20
      $region19: #{deconv_layer_forward.1} parent=11 // pred_region
        _
      $region20: #{deconv_layer_forward.1} parent=11 // pred_fallthru
        _
    $region12: #{deconv_layer_forward.1} parent=5 // pred_fallthru
      _
    %p124 = scmp.lt.s32.totalorder %s9, 2
    // Predicated region
    $region21: #{deconv_layer_forward.1} parent=5 // pred_check
      %p125 = pneg %p124
    $region22: #{deconv_layer_forward.1} parent=5 // pred_check_branch
      %127 = sbr.rel (%p125) target = $region24
    $region23: #{deconv_layer_forward.1} parent=5 // pred_region
      // Predicated region
      $region25: #{deconv_layer_forward.1} parent=23 // pred_check
        %p128 = pneg %p29
      $region26: #{deconv_layer_forward.1} parent=23 // pred_check_branch
        %130 = sbr.rel (%p128) target = $region28
      $region27: #{deconv_layer_forward.1} parent=23 // pred_region
        %p131 = scmp.lt.s32.totalorder %s9, 1
        %s132 = scalar_select %p131, %s9, 1
        %s133 = smul.addr %s132, 3
        %s134 = smul.addr %s133, 8
        %s135 = scalar_lea.vmem %s0, %s134
      $region28: #{deconv_layer_forward.1} parent=23 // pred_fallthru
        _
    $region24: #{deconv_layer_forward.1} parent=5 // pred_fallthru
      _
    %p136 = scmp.le.s32.totalorder 1, %s9
    %p137 = scmp.lt.s32.totalorder %s9, 3
    %p138 = pnand %p136, %p137
    %p139 = pneg %p138
    // Predicated region
    $region29: #{deconv_layer_forward.1} parent=5 // pred_check
      _
    $region30: #{deconv_layer_forward.1} parent=5 // pred_check_branch
      %141 = sbr.rel (%p138) target = $region32
    $region31: #{deconv_layer_forward.1} parent=5 // pred_region
      %s142 = ssub.s32 %s9, 1
      %p143 = scmp.lt.s32.totalorder %s14, 1
      %s144 = scalar_select %p143, %s14, 1
      %s145 = smul.addr %s144, 3
      %s146 = smul.addr %s145, 8
      %s147 = scalar_lea.vmem %s0, %s146
      %p148 = pneg %p35
      %p149 = pneg %p32
      %p150 = pneg %p56
      %p151 = pneg %p53
      %p152 = pneg %p77
      %p153 = pneg %p74
      %p154 = pneg %p103
      %p155 = pneg %p100
      %p156 = scmp.lt.s32.totalorder %s14, 1
      %s157 = scalar_select %p156, %s14, 1
      %s158 = smul.addr %s157, 2
      %s159 = smul.addr %s158, 4
      %s160 = scalar_lea.vmem %s3, %s159
      %p161 = scmp.lt.s32.totalorder %s14, 1
      %s162 = scalar_select %p161, %s14, 1
      %s163 = smul.addr %s162, 3
      %s164 = smul.addr %s163, 8
      %s165 = scalar_lea.vmem %s0, %s164
      %p166 = scmp.lt.s32.totalorder %s14, 1
      %s167 = scalar_select %p166, %s14, 1
      %s168 = smul.addr %s167, 2
      %s169 = smul.addr %s168, 4
      %s170 = scalar_lea.vmem %s3, %s169
      %v171 = vld [vmem:[%s1] sm:$0xf]
      %v172 = vld [vmem:[%s165] sm:$0xff]
      %v173 = vld [vmem:[%s165 + $0x8] sm:$0xff]
      %v174 = vld [vmem:[%s165 + $0x10] sm:$0xff]
      %178 = vrot.lane.b32.xlu0 %v172, 127
      %v179 = vpop.permute.xlu0 %178
      %180 = vrot.lane.b32.xlu0 %v173, 127
      %v181 = vpop.permute.xlu0 %180
      %182 = vrot.lane.b32.xlu0 %v174, 127
      %v183 = vpop.permute.xlu0 %182
      %vm184 = vcmask 1039360
      %v185 = vsel %vm184, %v179, %v181
      %v186 = vsel %vm184, %v181, %v183
      %190 = vrot.lane.b32.xlu0 %v172, 126
      %v191 = vpop.permute.xlu0 %190
      %192 = vrot.lane.b32.xlu0 %v173, 126
      %v193 = vpop.permute.xlu0 %192
      %194 = vrot.lane.b32.xlu0 %v174, 126
      %v195 = vpop.permute.xlu0 %194
      %vm196 = vcmask 1031168
      %v197 = vsel %vm196, %v191, %v193
      %v198 = vsel %vm196, %v193, %v195
      %202 = vrot.lane.b32.xlu0 %v172, 110
      %v203 = vpop.permute.xlu0 %202
      %204 = vrot.lane.b32.xlu0 %v173, 110
      %v205 = vpop.permute.xlu0 %204
      %206 = vrot.lane.b32.xlu0 %v174, 110
      %v207 = vpop.permute.xlu0 %206
      %vm208 = vcmask 900096
      %v209 = vsel %vm208, %v203, %v205
      %v210 = vsel %vm208, %v205, %v207
      %214 = vrot.lane.b32.xlu0 %v172, 109
      %v215 = vpop.permute.xlu0 %214
      %216 = vrot.lane.b32.xlu0 %v173, 109
      %v217 = vpop.permute.xlu0 %216
      %218 = vrot.lane.b32.xlu0 %v174, 109
      %v219 = vpop.permute.xlu0 %218
      %vm220 = vcmask 891904
      %v221 = vsel %vm220, %v215, %v217
      %v222 = vsel %vm220, %v217, %v219
      %226 = vrot.lane.b32.xlu0 %v172, 108
      %v227 = vpop.permute.xlu0 %226
      %228 = vrot.lane.b32.xlu0 %v173, 108
      %v229 = vpop.permute.xlu0 %228
      %230 = vrot.lane.b32.xlu0 %v174, 108
      %v231 = vpop.permute.xlu0 %230
      %vm232 = vcmask 883712
      %v233 = vsel %vm232, %v227, %v229
      %v234 = vsel %vm232, %v229, %v231
      %238 = vrot.lane.b32.xlu0 %v172, 92
      %v239 = vpop.permute.xlu0 %238
      %240 = vrot.lane.b32.xlu0 %v173, 92
      %v241 = vpop.permute.xlu0 %240
      %242 = vrot.lane.b32.xlu0 %v174, 92
      %v243 = vpop.permute.xlu0 %242
      %vm244 = vcmask 752640
      %v245 = vsel %vm244, %v239, %v241
      %v246 = vsel %vm244, %v241, %v243
      %250 = vrot.lane.b32.xlu0 %v172, 91
      %v251 = vpop.permute.xlu0 %250
      %252 = vrot.lane.b32.xlu0 %v173, 91
      %v253 = vpop.permute.xlu0 %252
      %254 = vrot.lane.b32.xlu0 %v174, 91
      %v255 = vpop.permute.xlu0 %254
      %vm256 = vcmask 744448
      %v257 = vsel %vm256, %v251, %v253
      %v258 = vsel %vm256, %v253, %v255
      %262 = vrot.lane.b32.xlu0 %v172, 90
      %v263 = vpop.permute.xlu0 %262
      %264 = vrot.lane.b32.xlu0 %v173, 90
      %v265 = vpop.permute.xlu0 %264
      %266 = vrot.lane.b32.xlu0 %v174, 90
      %v267 = vpop.permute.xlu0 %266
      %vm268 = vcmask 736256
      %v269 = vsel %vm268, %v263, %v265
      %v270 = vsel %vm268, %v265, %v267
      %vm274 = vcmask 588800
      %v276 = vsel %vm274, %v171, 0
      %278 = vmatpush.msra.mxu0 0.0
      %279 = vmatpush.msra.mxu0 0.0
      %280 = vmatpush.msra.mxu0 0.0
      %281 = vmatpush.msra.mxu0 0.0
      %282 = vmatpush.msra.mxu0 0.0
      %283 = vmatpush.msra.mxu0 0.0
      %284 = vmatpush.msra.mxu0 0.0
      %285 = vmatpush.msra.mxu0 %v269
      %286 = vmatpush.msra.mxu0 %v257
      %287 = vmatpush.msra.mxu0 %v245
      %288 = vmatpush.msra.mxu0 %v233
      %289 = vmatpush.msra.mxu0 %v221
      %290 = vmatpush.msra.mxu0 %v209
      %291 = vmatpush.msra.mxu0 %v197
      %292 = vmatpush.msra.mxu0 %v185
      %293 = vmatpush.msra.mxu0 %v172
      %294 = vmatmul.f32.gmra.mxu0 %v276
      %v295 = vpop.f32.mrf.mxu0
      %v296 = vadd.f32 0.0, %v295
      %297 = vdwg.mxu0
      %298 = vmatpush.msra.mxu0 0.0
      %299 = vmatpush.msra.mxu0 0.0
      %300 = vmatpush.msra.mxu0 0.0
      %301 = vmatpush.msra.mxu0 0.0
      %302 = vmatpush.msra.mxu0 0.0
      %303 = vmatpush.msra.mxu0 0.0
      %304 = vmatpush.msra.mxu0 0.0
      %305 = vmatpush.msra.mxu0 %v270
      %306 = vmatpush.msra.mxu0 %v258
      %307 = vmatpush.msra.mxu0 %v246
      %308 = vmatpush.msra.mxu0 %v234
      %309 = vmatpush.msra.mxu0 %v222
      %310 = vmatpush.msra.mxu0 %v210
      %311 = vmatpush.msra.mxu0 %v198
      %312 = vmatpush.msra.mxu0 %v186
      %313 = vmatpush.msra.mxu0 %v173
      %314 = vmatmul.f32.gmra.mxu0 %v276
      %v315 = vpop.f32.mrf.mxu0
      %v316 = vadd.f32 0.0, %v315
      %317 = vdwg.mxu0
      %318 = vmatpush.msra.mxu0 0.0
      %319 = vmatpush.msra.mxu0 0.0
      %320 = vmatpush.msra.mxu0 0.0
      %321 = vmatpush.msra.mxu0 0.0
      %322 = vmatpush.msra.mxu0 0.0
      %323 = vmatpush.msra.mxu0 0.0
      %324 = vmatpush.msra.mxu0 0.0
      %325 = vmatpush.msra.mxu0 %v267
      %326 = vmatpush.msra.mxu0 %v255
      %327 = vmatpush.msra.mxu0 %v243
      %328 = vmatpush.msra.mxu0 %v231
      %329 = vmatpush.msra.mxu0 %v219
      %330 = vmatpush.msra.mxu0 %v207
      %331 = vmatpush.msra.mxu0 %v195
      %332 = vmatpush.msra.mxu0 %v183
      %333 = vmatpush.msra.mxu0 %v174
      %334 = vmatmul.f32.gmra.mxu0 %v276
      %v335 = vpop.f32.mrf.mxu0
      %v336 = vadd.f32 0.0, %v335
      %337 = vdwg.mxu0
      %339 = vrot.lane.b32.xlu0 %v296, 126
      %v340 = vpop.permute.xlu0 %339
      %342 = vrot.lane.b32.xlu0 %v296, 124
      %v343 = vpop.permute.xlu0 %342
      %345 = vrot.lane.b32.xlu0 %v296, 122
      %v346 = vpop.permute.xlu0 %345
      %348 = vrot.lane.b32.xlu0 %v296, 120
      %v349 = vpop.permute.xlu0 %348
      %351 = vrot.lane.b32.xlu0 %v296, 118
      %v352 = vpop.permute.xlu0 %351
      %354 = vrot.lane.b32.xlu0 %v296, 116
      %v355 = vpop.permute.xlu0 %354
      %358 = vrot.lane.b32.xlu0 %v296, 114
      %v359 = vpop.permute.xlu0 %358
      %360 = vrot.lane.b32.xlu0 %v316, 114
      %v361 = vpop.permute.xlu0 %360
      %vm362 = vcmask 932864
      %v363 = vsel %vm362, %v359, %v361
      %365 = vrot.lane.b32.xlu0 %v316, 112
      %v366 = vpop.permute.xlu0 %365
      %368 = vrot.lane.b32.xlu0 %v316, 110
      %v369 = vpop.permute.xlu0 %368
      %371 = vrot.lane.b32.xlu0 %v316, 108
      %v372 = vpop.permute.xlu0 %371
      %374 = vrot.lane.b32.xlu0 %v316, 106
      %v375 = vpop.permute.xlu0 %374
      %377 = vrot.lane.b32.xlu0 %v316, 104
      %v378 = vpop.permute.xlu0 %377
      %380 = vrot.lane.b32.xlu0 %v316, 102
      %v381 = vpop.permute.xlu0 %380
      %384 = vrot.lane.b32.xlu0 %v316, 100
      %v385 = vpop.permute.xlu0 %384
      %386 = vrot.lane.b32.xlu0 %v336, 100
      %v387 = vpop.permute.xlu0 %386
      %vm388 = vcmask 818176
      %v389 = vsel %vm388, %v385, %v387
      %391 = vrot.lane.b32.xlu0 %v336, 98
      %v392 = vpop.permute.xlu0 %391
      %vm394 = vcmask 130048
      %v395 = vsel %vm394, %v296, %v340
      %vm396 = vcmask 261120
      %v397 = vsel %vm396, %v395, %v343
      %vm398 = vcmask 392192
      %v399 = vsel %vm398, %v397, %v346
      %vm400 = vcmask 523264
      %v401 = vsel %vm400, %v399, %v349
      %vm402 = vcmask 654336
      %v403 = vsel %vm402, %v401, %v352
      %vm404 = vcmask 785408
      %v405 = vsel %vm404, %v403, %v355
      %vm406 = vcmask 916480
      %v407 = vsel %vm406, %v405, %v363
      %v408 = vsel %vm394, %v366, %v369
      %v409 = vsel %vm396, %v408, %v372
      %v410 = vsel %vm398, %v409, %v375
      %v411 = vsel %vm400, %v410, %v378
      %v412 = vsel %vm402, %v411, %v381
      %v413 = vsel %vm404, %v412, %v389
      %v414 = vsel %vm406, %v413, %v392
      %vm415 = vcmask 1043456
      %v416 = vsel %vm415, %v407, 0.0
      %v417 = vsel %vm415, %v414, 0.0
      %v418 = vadd.f32 %v416, %v417
      %419 = vadd.xlane.f32.xlu0 %v418
      %v420 = vpop.xlane.xlu0 %419
      %v421 = vrcp.pop 256.0
      %v422 = vmul.f32 256.0, %v421
      %v423 = vsub.f32 1.0, %v422
      %v424 = vmul.f32 %v421, %v423
      %v425 = vadd.f32 %v421, %v424
      %vm426 = vweird.f32 %v421
      %v427 = vsel %vm426, %v421, %v425
      %v428 = vmul.f32 %v420, %v427
      %v429 = vsub.f32 %v407, %v428
      %v430 = vsub.f32 %v414, %v428
      %v431 = vmul.f32 %v429, %v429
      %v432 = vmul.f32 %v430, %v430
      %v433 = vsel %vm415, %v431, 0.0
      %v434 = vsel %vm415, %v432, 0.0
      %v435 = vadd.f32 %v433, %v434
      %436 = vadd.xlane.f32.xlu0 %v435
      %v437 = vpop.xlane.xlu0 %436
      %v438 = vmul.f32 %v437, %v427
      %v439 = vadd.f32 %v438, 1e-05
      %v440 = vrsqrt.pop %v439
      %v441 = vmul.f32 %v440, %v439
      %v442 = vmul.f32 %v441, %v440
      %v443 = vmul.f32 0.5, %v442
      %v444 = vsub.f32 1.5, %v443
      %v445 = vmul.f32 %v440, %v444
      %vm446 = vweird.f32 %v439
      %vm447 = vweird.f32 %v440
      %vm448 = vmor %vm446, %vm447
      %v449 = vsel %vm448, %v440, %v445
      %v450 = vmul.f32 %v429, %v449
      %v451 = vmul.f32 %v430, %v449
      %s452 = scalar_lea.vmem %s2, 4
      %v453 = vld [vmem:[%s452] sm:$0xf]
      %455 = vset.pattern.permute.xlu0 0
      %456 = vperm.xlu0 %455, %v453
      %v457 = vpop.permute.xlu0 %456
      %v459 = vmul.f32 %v450, %v457
      %v460 = vmul.f32 %v451, %v457
      %s461 = scalar_lea.vmem %s2, 8
      %v462 = vld [vmem:[%s461] sm:$0xf]
      %464 = vset.pattern.permute.xlu0 0
      %465 = vperm.xlu0 %464, %v462
      %v466 = vpop.permute.xlu0 %465
      %v468 = vadd.f32 %v459, %v466
      %v469 = vadd.f32 %v460, %v466
      %v472 = vrot.slane %v469, 4
      %v473 = vsel %vm415, %v468, %v472
      %475 = vst [vmem:[%s170] sm:$0xff] %v473
      %p476 = scmp.lt.s32.totalorder %s14, 1
      %s477 = scalar_select %p476, %s14, 1
      %s478 = smul.addr %s477, 2
      %s479 = smul.addr %s478, 4
      %s480 = scalar_lea.vmem %s3, %s479
      // Predicated region
      $region33: #{deconv_layer_forward.1} parent=31 // pred_check
        %p481 = pneg %p100
      $region34: #{deconv_layer_forward.1} parent=31 // pred_check_branch
        %483 = sbr.rel (%p481) target = $region36
      $region35: #{deconv_layer_forward.1} parent=31 // pred_region
        _
      $region36: #{deconv_layer_forward.1} parent=31 // pred_fallthru
        _
    $region32: #{deconv_layer_forward.1} parent=5 // pred_fallthru
      _
    %p484 = scmp.le.s32.totalorder 2, %s9
    // Predicated region
    $region37: #{deconv_layer_forward.1} parent=5 // pred_check
      %p485 = pneg %p484
    $region38: #{deconv_layer_forward.1} parent=5 // pred_check_branch
      %487 = sbr.rel (%p485) target = $region40
    $region39: #{deconv_layer_forward.1} parent=5 // pred_region
      %s488 = ssub.s32 %s9, 2
      // Predicated region
      $region41: #{deconv_layer_forward.1} parent=39 // pred_check
        %p489 = pneg %p106
      $region42: #{deconv_layer_forward.1} parent=39 // pred_check_branch
        %491 = sbr.rel (%p489) target = $region44
      $region43: #{deconv_layer_forward.1} parent=39 // pred_region
        %p492 = scmp.lt.s32.totalorder %s15, 1
        %s493 = scalar_select %p492, %s15, 1
        %s494 = smul.addr %s493, 2
        %s495 = smul.addr %s494, 4
        %s496 = scalar_lea.vmem %s3, %s495
      $region44: #{deconv_layer_forward.1} parent=39 // pred_fallthru
        _
    $region40: #{deconv_layer_forward.1} parent=5 // pred_fallthru
      _
  $region6: #{deconv_layer_forward.1} parent=0 // loop_footer
    %s13 = sadd.s32 1, %s9
  $region7: #{deconv_layer_forward.1} parent=0 // loop_footer_branch
    %8 = sbr.rel target = $region3
  $region8: #{deconv_layer_forward.1} parent=0 // loop_exit
    _

</llo_original>
